<compile_context>
chip_gen: v7x
topology: tpu7x:2x2x1
jax: 0.10.0
libtpu: 0.0.40
codegen_flags: <defaults>
</compile_context>

<pallas_src>
import functools

import numpy as np
import jax
import jax.numpy as jnp
from jax.experimental import pallas as pl
from jax.experimental.pallas import tpu as pltpu


# ----------------------------------------------------------------------------
# small helpers
# ----------------------------------------------------------------------------
def _round_up(n, m):
    return ((n + m - 1) // m) * m


def _pad2d(a, rows, cols):
    a = np.asarray(a, np.float32)
    out = np.zeros((rows, cols), np.float32)
    out[: a.shape[0], : a.shape[1]] = a
    return out


def _apply_activation(y, name):
    if name == "relu":
        return jnp.maximum(y, 0.0)
    elif name == "sigmoid":
        return jax.nn.sigmoid(y)
    elif name == "tanh":
        return jnp.tanh(y)
    elif name == "leaky_relu":
        return jnp.where(y >= 0, y, 0.01 * y)          # PyTorch default slope
    elif name == "elu":
        return jnp.where(y >= 0, y, jnp.expm1(y))      # alpha = 1
    elif name == "none":
        return y
    else:
        raise NotImplementedError(name)


# ----------------------------------------------------------------------------
# Pallas kernel: whole ConditionalMADE MLP fused into one call
# ----------------------------------------------------------------------------
def _fused_made_kernel(*refs, acts):
    # refs = (cond_ref, x_ref, wc, wx, b0, w1, b1, ..., wL, bL, out_ref)
    cond_ref, x_ref = refs[0], refs[1]
    out_ref = refs[-1]
    wrefs = refs[2:-1]

    # Layer 0: split dot replaces concat([condition, x]) @ W0.T.
    h = jnp.dot(cond_ref[...], wrefs[0][...], preferred_element_type=jnp.float32)
    h = h + jnp.dot(x_ref[...], wrefs[1][...], preferred_element_type=jnp.float32)
    h = h + wrefs[2][...]
    h = _apply_activation(h, acts[0])

    idx = 3
    for l in range(1, len(acts)):
        w = wrefs[idx][...]
        b = wrefs[idx + 1][...]
        idx += 2
        h = jnp.dot(h, w, preferred_element_type=jnp.float32) + b
        h = _apply_activation(h, acts[l])

    out_ref[...] = h.astype(out_ref.dtype)


def fused_conditional_made_pallas(x, condition, weights, acts, out_dim):
    """Run the fused MADE forward. `weights` are the padded / pre-masked /
    pre-transposed arrays produced by prepare_fused_params."""
    B = x.shape[0]
    cond_pad = weights[0].shape[0]
    in_pad = weights[1].shape[0]
    out_pad = weights[-2].shape[1]

    # Batch tiling: multiple of 8 sublanes; cap tile at 128 rows.
    TB = min(128, _round_up(B, 8))
    Bpad = _round_up(B, TB)
    grid = (Bpad // TB,)

    xp = jnp.pad(x.astype(jnp.float32),
                 ((0, Bpad - B), (0, in_pad - x.shape[1])))
    cp = jnp.pad(condition.astype(jnp.float32),
                 ((0, Bpad - B), (0, cond_pad - condition.shape[1])))

    in_specs = [
        pl.BlockSpec((TB, cond_pad), lambda i: (i, 0)),
        pl.BlockSpec((TB, in_pad), lambda i: (i, 0)),
    ]
    # Weights / biases stay resident across batch tiles.
    for w in weights:
        r, c = w.shape
        in_specs.append(pl.BlockSpec((r, c), lambda i: (0, 0)))

    out = pl.pallas_call(
        functools.partial(_fused_made_kernel, acts=tuple(acts)),
        out_shape=jax.ShapeDtypeStruct((Bpad, out_pad), jnp.float32),
        grid=grid,
        in_specs=in_specs,
        out_specs=pl.BlockSpec((TB, out_pad), lambda i: (i, 0)),
        compiler_params=pltpu.CompilerParams(
            dimension_semantics=("parallel",)),
    )(cp, xp, *weights)

    return out[:B, :out_dim]


# ----------------------------------------------------------------------------
# ConditionalMADE: mask construction (numpy, deterministic) + parameter init
# ----------------------------------------------------------------------------
def _ar_mask(max_in, max_out):
    # mask[j, i] = 1 if max_out[j] >= max_in[i] else 0  (shape (out_dim, in_dim))
    return (np.asarray(max_out)[:, None] >= np.asarray(max_in)[None, :]).astype(np.float32)


def build_conditional_made(input_dim, hidden_dims, condition_dim,
                           order=None, activation="relu", seed=0):
    """Replicates ConditionalMADE._create_layers (permute=False, sample=False)."""
    _max_in = np.arange(1, input_dim + 1) if order is None else np.asarray(order)
    max_in = _max_in
    in_dim = input_dim

    masks = []
    layer_in_dims = []
    for i, h_dim in enumerate(hidden_dims):
        n = in_dim - max_in.min()
        max_out = np.mod(np.arange(h_dim), n) + max_in.min()
        mask = _ar_mask(max_in, max_out)                      # (h_dim, in_dim)
        if i == 0:
            cond_mask = np.ones((h_dim, condition_dim), np.float32)
            mask = np.concatenate([cond_mask, mask], axis=1)  # (h_dim, cond+in)
            layer_in_dims.append(in_dim + condition_dim)
        else:
            layer_in_dims.append(in_dim)
        masks.append(mask)
        in_dim = h_dim
        max_in = max_out
    final_mask = _ar_mask(max_in, _max_in - 1)                # (input_dim, in_dim)
    masks.append(final_mask)
    layer_in_dims.append(in_dim)
    layer_out_dims = list(hidden_dims) + [input_dim]

    # Deterministic parameter init (nn.Linear-style uniform(-k, k), k = 1/sqrt(fan_in)).
    key = jax.random.PRNGKey(seed)
    params = []
    for din, dout, mask in zip(layer_in_dims, layer_out_dims, masks):
        key, kw, kb = jax.random.split(key, 3)
        k = 1.0 / np.sqrt(din)
        w = jax.random.uniform(kw, (dout, din), jnp.float32, -k, k)
        b = jax.random.uniform(kb, (dout,), jnp.float32, -k, k)
        params.append((w, jnp.asarray(mask), b))

    acts = [activation] * len(hidden_dims) + ["none"]
    return params, acts


def prepare_fused_params(params, condition_dim, lane=128):
    """Fold masks into weights, pre-transpose to (Din, Dout), zero-pad feature
    dims to multiples of `lane`, and split layer 0 into (cond, x) halves.
    Returns a flat list of arrays in the order the fused kernel expects.
    Note: weights could be cast to bfloat16 on v6e/v7x (f32 accumulation kept);
    kept f32 here to match the f32 reference bit-for-bit within tolerance."""
    w0, m0, b0 = params[0]
    mw0 = np.asarray(m0 * w0)                                 # (H0, C + D)
    input_dim = mw0.shape[1] - condition_dim
    h0 = mw0.shape[0]

    cond_pad = _round_up(condition_dim, lane)
    in_pad = _round_up(input_dim, lane)
    h0_pad = _round_up(h0, lane)

    wc = _pad2d(mw0[:, :condition_dim].T, cond_pad, h0_pad)   # (Cpad, H0pad)
    wx = _pad2d(mw0[:, condition_dim:].T, in_pad, h0_pad)     # (Dpad, H0pad)
    b0p = _pad2d(np.asarray(b0)[None, :], 1, h0_pad)          # (1, H0pad)

    weights = [jnp.asarray(wc), jnp.asarray(wx), jnp.asarray(b0p)]
    prev_pad = h0_pad
    for (w, m, b) in params[1:]:
        mw = np.asarray(m * w)                                # (Dout, Din)
        dout = mw.shape[0]
        dout_pad = _round_up(dout, lane)
        wt = _pad2d(mw.T, prev_pad, dout_pad)                 # (Din_pad, Dout_pad)
        bp = _pad2d(np.asarray(b)[None, :], 1, dout_pad)
        weights.append(jnp.asarray(wt))
        weights.append(jnp.asarray(bp))
        prev_pad = dout_pad

    out_dim = params[-1][0].shape[0]
    return weights, out_dim


# ----------------------------------------------------------------------------
# Pure-JAX reference (unpadded, unfused) for validation
# ----------------------------------------------------------------------------
def conditional_made_forward_ref(x, condition, params, acts):
    h = jnp.concatenate([condition, x], axis=1)
    for (w, m, b), act in zip(params, acts):
        h = h @ (m * w).T + b
        h = _apply_activation(h, act)
    return h


# ----------------------------------------------------------------------------
if __name__ == "__main__":
    input_dim = 8
    hidden_dims = [32, 32]
    condition_dim = 4
    batch = 2

    params, acts = build_conditional_made(
        input_dim, hidden_dims, condition_dim, activation="relu", seed=0)
    weights, out_dim = prepare_fused_params(params, condition_dim)

    key = jax.random.PRNGKey(0)
    kx, kc = jax.random.split(key)
    x = jax.random.normal(kx, (batch, input_dim), jnp.float32)
    condition = jax.random.normal(kc, (batch, condition_dim), jnp.float32)

    out = fused_conditional_made_pallas(x, condition, weights, acts, out_dim)
    out = jax.block_until_ready(out)

    ref = conditional_made_forward_ref(x, condition, params, acts)
    assert out.shape == (batch, input_dim)
    np.testing.assert_allclose(np.asarray(out), np.asarray(ref), rtol=1e-5, atol=1e-5)

    print("KERNEL_OK")
</pallas_src>

<mosaic_0001>
module attributes {stable_mosaic.version = 11 : i64} {
  func.func @_fused_made_kernel(%arg0: i32, %arg1: memref<8x128xf32, #tpu.memory_space<vmem>>, %arg2: memref<8x128xf32, #tpu.memory_space<vmem>>, %arg3: memref<128x128xf32, #tpu.memory_space<vmem>>, %arg4: memref<128x128xf32, #tpu.memory_space<vmem>>, %arg5: memref<1x128xf32, #tpu.memory_space<vmem>>, %arg6: memref<128x128xf32, #tpu.memory_space<vmem>>, %arg7: memref<1x128xf32, #tpu.memory_space<vmem>>, %arg8: memref<128x128xf32, #tpu.memory_space<vmem>>, %arg9: memref<1x128xf32, #tpu.memory_space<vmem>>, %arg10: memref<8x128xf32, #tpu.memory_space<vmem>>) attributes {dimension_semantics = [#tpu.dimension_semantics<parallel>], iteration_bounds = array<i64: 1>, scalar_prefetch = 0 : i64, scratch_operands = 0 : i64, tpu.core_type = #tpu.core_type<tc>, window_params = [{transform_indices = @transform_0, window_bounds = array<i64: 8, 128>}, {transform_indices = @transform_1, window_bounds = array<i64: 8, 128>}, {pipeline_mode = #tpu.pipeline_mode<synchronous>, transform_indices = @transform_2, window_bounds = array<i64: 128, 128>}, {pipeline_mode = #tpu.pipeline_mode<synchronous>, transform_indices = @transform_3, window_bounds = array<i64: 128, 128>}, {pipeline_mode = #tpu.pipeline_mode<synchronous>, transform_indices = @transform_4, window_bounds = array<i64: 1, 128>}, {pipeline_mode = #tpu.pipeline_mode<synchronous>, transform_indices = @transform_5, window_bounds = array<i64: 128, 128>}, {pipeline_mode = #tpu.pipeline_mode<synchronous>, transform_indices = @transform_6, window_bounds = array<i64: 1, 128>}, {pipeline_mode = #tpu.pipeline_mode<synchronous>, transform_indices = @transform_7, window_bounds = array<i64: 128, 128>}, {pipeline_mode = #tpu.pipeline_mode<synchronous>, transform_indices = @transform_8, window_bounds = array<i64: 1, 128>}, {transform_indices = @transform_9, window_bounds = array<i64: 8, 128>}]} {
    %c0 = arith.constant 0 : index
    %c0_0 = arith.constant 0 : index
    %0 = vector.load %arg1[%c0, %c0_0] : memref<8x128xf32, #tpu.memory_space<vmem>>, vector<8x128xf32>
    %c0_1 = arith.constant 0 : index
    %c0_2 = arith.constant 0 : index
    %1 = vector.load %arg3[%c0_1, %c0_2] : memref<128x128xf32, #tpu.memory_space<vmem>>, vector<128x128xf32>
    %cst = arith.constant dense<0.000000e+00> : vector<8x128xf32>
    %2 = tpu.matmul %0, %1, %cst {dimension_numbers = #tpu.dot_dimension_numbers<[1], [0], [0], [1], [0, 0, 1, 1], [], []>} : vector<8x128xf32>, vector<128x128xf32>, vector<8x128xf32> -> vector<8x128xf32>
    %c0_3 = arith.constant 0 : index
    %c0_4 = arith.constant 0 : index
    %3 = vector.load %arg2[%c0_3, %c0_4] : memref<8x128xf32, #tpu.memory_space<vmem>>, vector<8x128xf32>
    %c0_5 = arith.constant 0 : index
    %c0_6 = arith.constant 0 : index
    %4 = vector.load %arg4[%c0_5, %c0_6] : memref<128x128xf32, #tpu.memory_space<vmem>>, vector<128x128xf32>
    %cst_7 = arith.constant dense<0.000000e+00> : vector<8x128xf32>
    %5 = tpu.matmul %3, %4, %cst_7 {dimension_numbers = #tpu.dot_dimension_numbers<[1], [0], [0], [1], [0, 0, 1, 1], [], []>} : vector<8x128xf32>, vector<128x128xf32>, vector<8x128xf32> -> vector<8x128xf32>
    %6 = arith.addf %2, %5 : vector<8x128xf32>
    %c0_8 = arith.constant 0 : index
    %c0_9 = arith.constant 0 : index
    %7 = vector.load %arg5[%c0_8, %c0_9] : memref<1x128xf32, #tpu.memory_space<vmem>>, vector<1x128xf32>
    %8 = vector.broadcast %7 : vector<1x128xf32> to vector<8x128xf32>
    %9 = arith.addf %6, %8 : vector<8x128xf32>
    %cst_10 = arith.constant 0.000000e+00 : f32
    %10 = vector.broadcast %cst_10 : f32 to vector<8x128xf32>
    %11 = arith.maximumf %9, %10 : vector<8x128xf32>
    %c0_11 = arith.constant 0 : index
    %c0_12 = arith.constant 0 : index
    %12 = vector.load %arg6[%c0_11, %c0_12] : memref<128x128xf32, #tpu.memory_space<vmem>>, vector<128x128xf32>
    %c0_13 = arith.constant 0 : index
    %c0_14 = arith.constant 0 : index
    %13 = vector.load %arg7[%c0_13, %c0_14] : memref<1x128xf32, #tpu.memory_space<vmem>>, vector<1x128xf32>
    %cst_15 = arith.constant dense<0.000000e+00> : vector<8x128xf32>
    %14 = tpu.matmul %11, %12, %cst_15 {dimension_numbers = #tpu.dot_dimension_numbers<[1], [0], [0], [1], [0, 0, 1, 1], [], []>} : vector<8x128xf32>, vector<128x128xf32>, vector<8x128xf32> -> vector<8x128xf32>
    %15 = vector.broadcast %13 : vector<1x128xf32> to vector<8x128xf32>
    %16 = arith.addf %14, %15 : vector<8x128xf32>
    %cst_16 = arith.constant 0.000000e+00 : f32
    %17 = vector.broadcast %cst_16 : f32 to vector<8x128xf32>
    %18 = arith.maximumf %16, %17 : vector<8x128xf32>
    %c0_17 = arith.constant 0 : index
    %c0_18 = arith.constant 0 : index
    %19 = vector.load %arg8[%c0_17, %c0_18] : memref<128x128xf32, #tpu.memory_space<vmem>>, vector<128x128xf32>
    %c0_19 = arith.constant 0 : index
    %c0_20 = arith.constant 0 : index
    %20 = vector.load %arg9[%c0_19, %c0_20] : memref<1x128xf32, #tpu.memory_space<vmem>>, vector<1x128xf32>
    %cst_21 = arith.constant dense<0.000000e+00> : vector<8x128xf32>
    %21 = tpu.matmul %18, %19, %cst_21 {dimension_numbers = #tpu.dot_dimension_numbers<[1], [0], [0], [1], [0, 0, 1, 1], [], []>} : vector<8x128xf32>, vector<128x128xf32>, vector<8x128xf32> -> vector<8x128xf32>
    %22 = vector.broadcast %20 : vector<1x128xf32> to vector<8x128xf32>
    %23 = arith.addf %21, %22 : vector<8x128xf32>
    %c0_22 = arith.constant 0 : index
    %c0_23 = arith.constant 0 : index
    %24 = vector.load %arg10[%c0_22, %c0_23] : memref<8x128xf32, #tpu.memory_space<vmem>>, vector<8x128xf32>
    tpu.vector_store %arg10[%c0_22, %c0_23], %23 {strides = array<i32>} : memref<8x128xf32, #tpu.memory_space<vmem>>, vector<8x128xf32>,
    return
  }
  func.func @transform_0(%arg0: i32) -> (i32, i32) {
    %c0_i32 = arith.constant 0 : i32
    %c0_i32_0 = arith.constant 0 : i32
    return %arg0, %c0_i32 : i32, i32
  }
  func.func @transform_1(%arg0: i32) -> (i32, i32) {
    %c0_i32 = arith.constant 0 : i32
    %c0_i32_0 = arith.constant 0 : i32
    return %arg0, %c0_i32 : i32, i32
  }
  func.func @transform_2(%arg0: i32) -> (i32, i32) {
    %c0_i32 = arith.constant 0 : i32
    %c0_i32_0 = arith.constant 0 : i32
    %c0_i32_1 = arith.constant 0 : i32
    return %c0_i32, %c0_i32_0 : i32, i32
  }
  func.func @transform_3(%arg0: i32) -> (i32, i32) {
    %c0_i32 = arith.constant 0 : i32
    %c0_i32_0 = arith.constant 0 : i32
    %c0_i32_1 = arith.constant 0 : i32
    return %c0_i32, %c0_i32_0 : i32, i32
  }
  func.func @transform_4(%arg0: i32) -> (i32, i32) {
    %c0_i32 = arith.constant 0 : i32
    %c0_i32_0 = arith.constant 0 : i32
    %c0_i32_1 = arith.constant 0 : i32
    return %c0_i32, %c0_i32_0 : i32, i32
  }
  func.func @transform_5(%arg0: i32) -> (i32, i32) {
    %c0_i32 = arith.constant 0 : i32
    %c0_i32_0 = arith.constant 0 : i32
    %c0_i32_1 = arith.constant 0 : i32
    return %c0_i32, %c0_i32_0 : i32, i32
  }
  func.func @transform_6(%arg0: i32) -> (i32, i32) {
    %c0_i32 = arith.constant 0 : i32
    %c0_i32_0 = arith.constant 0 : i32
    %c0_i32_1 = arith.constant 0 : i32
    return %c0_i32, %c0_i32_0 : i32, i32
  }
  func.func @transform_7(%arg0: i32) -> (i32, i32) {
    %c0_i32 = arith.constant 0 : i32
    %c0_i32_0 = arith.constant 0 : i32
    %c0_i32_1 = arith.constant 0 : i32
    return %c0_i32, %c0_i32_0 : i32, i32
  }
  func.func @transform_8(%arg0: i32) -> (i32, i32) {
    %c0_i32 = arith.constant 0 : i32
    %c0_i32_0 = arith.constant 0 : i32
    %c0_i32_1 = arith.constant 0 : i32
    return %c0_i32, %c0_i32_0 : i32, i32
  }
  func.func @transform_9(%arg0: i32) -> (i32, i32) {
    %c0_i32 = arith.constant 0 : i32
    %c0_i32_0 = arith.constant 0 : i32
    return %arg0, %c0_i32 : i32, i32
  }
}

</mosaic_0001>

<llo_original>
// kernel: tpu_custom_call.1
$region0: #{tpu_custom_call.1}
  #allocation0 [shape = 'u32[]', space=smem, size = 0x4, offset = 0x4, fixed_abs, tag = 'smem constant byte address 0x4 - core index']
  #allocation1 [shape = 'u32[144,128]{1,0:T(1,128)}', space=vmem, size = 0x12000, scoped, tag = 'internal scratch']
  %s0 = inlined_call_operand.hbm [shape: f32[8,128], index: 0, kind: input, shape index: {}]
  %s1 = inlined_call_operand.hbm [shape: f32[8,128], index: 1, kind: input, shape index: {}]
  %s2 = inlined_call_operand.hbm [shape: f32[128,128], index: 2, kind: input, shape index: {}]
  %s3 = inlined_call_operand.hbm [shape: f32[128,128], index: 3, kind: input, shape index: {}]
  %s4 = inlined_call_operand.vmem [shape: f32[1,128], index: 4, kind: input, shape index: {}]
  %s5 = inlined_call_operand.hbm [shape: f32[128,128], index: 5, kind: input, shape index: {}]
  %s6 = inlined_call_operand.vmem [shape: f32[1,128], index: 6, kind: input, shape index: {}]
  %s7 = inlined_call_operand.hbm [shape: f32[128,128], index: 7, kind: input, shape index: {}]
  %s8 = inlined_call_operand.vmem [shape: f32[1,128], index: 8, kind: input, shape index: {}]
  %s9 = inlined_call_operand.hbm [shape: f32[8,128], index: 9, kind: output, shape index: {}]
  %s10 = sld [smem:[#allocation0]]
  $region70: #{tpu_custom_call.1} parent=0
    _
  %s12 = ssub.s32 1, %s10
  %s13 = scalar_select 0, %s12, %s10
  $region1: #{tpu_custom_call.1} parent=0
    #allocation2 [shape = 'u8[4096]{0}', space=vmem, size = 0x1000, scoped, tag = 'input window, operand 0, single buffered']
    #allocation3 [shape = 's32[1]{0}', space=sflag, size = 0x4, scoped, tag = 'scoped memory for tpu_custom_call.1']
    #allocation4 [shape = 's32[1]{0}', space=sflag, size = 0x4, scoped, tag = 'scoped memory for tpu_custom_call.1']
    #allocation5 [shape = 'u8[4096]{0}', space=vmem, size = 0x1000, scoped, tag = 'input window, operand 1, single buffered']
    #allocation6 [shape = 's32[1]{0}', space=sflag, size = 0x4, scoped, tag = 'scoped memory for tpu_custom_call.1']
    #allocation7 [shape = 'u8[65536]{0}', space=vmem, size = 0x10000, scoped, tag = 'input window, operand 2, single buffered']
    #allocation8 [shape = 'u8[65536]{0}', space=vmem, size = 0x10000, scoped, tag = 'input window, operand 3, single buffered']
    #allocation9 [shape = 's32[1]{0}', space=sflag, size = 0x4, scoped, tag = 'scoped memory for tpu_custom_call.1']
    #allocation10 [shape = 'u8[65536]{0}', space=vmem, size = 0x10000, scoped, tag = 'input window, operand 5, single buffered']
    #allocation11 [shape = 'u8[65536]{0}', space=vmem, size = 0x10000, scoped, tag = 'input window, operand 7, single buffered']
    #allocation12 [shape = 's32[1]{0}', space=sflag, size = 0x4, scoped, tag = 'scoped memory for tpu_custom_call.1']
    #allocation13 [shape = 'u8[4096]{0}', space=vmem, size = 0x1000, scoped, tag = 'output window, operand 0, single buffered']
    %14 = vsyncpa [#allocation3], 0
    %15 = vsyncpa [#allocation6], 0
    %16 = vsyncpa [#allocation9], 0
    %17 = vsyncpa [#allocation12], 0
    %18 = vsyncpa [#allocation4], 0
    // Predicated region
    $region2: #{tpu_custom_call.1} parent=1 // pred_check
      _
    $region3: #{tpu_custom_call.1} parent=1 // pred_check_branch
      %20 = sbr.rel (0) target = $region5
    $region4: #{tpu_custom_call.1} parent=1 // pred_region
      %s22 = ssub.s32 128, 128
      %23 = vsyncadd [#allocation3], %s22
      %s25 = sshll.u32 [#allocation2], 4
      %s26 = int_to_ptr.vmem [resolvable:$true] %s25
      %28 = dma.hbm_to_vmem [thread:$0]  %s0, 128, %s26, [#allocation3]
    $region5: #{tpu_custom_call.1} parent=1 // pred_fallthru
      _
    // Predicated region
    $region6: #{tpu_custom_call.1} parent=1 // pred_check
      _
    $region7: #{tpu_custom_call.1} parent=1 // pred_check_branch
      %30 = sbr.rel (0) target = $region9
    $region8: #{tpu_custom_call.1} parent=1 // pred_region
      %s32 = ssub.s32 128, 128
      %33 = vsyncadd [#allocation6], %s32
      %s35 = sshll.u32 [#allocation5], 4
      %s36 = int_to_ptr.vmem [resolvable:$true] %s35
      %38 = dma.hbm_to_vmem [thread:$0]  %s1, 128, %s36, [#allocation6]
    $region9: #{tpu_custom_call.1} parent=1 // pred_fallthru
      _
    // Predicated region
    $region10: #{tpu_custom_call.1} parent=1 // pred_check
      _
    $region11: #{tpu_custom_call.1} parent=1 // pred_check_branch
      %40 = sbr.rel (0) target = $region13
    $region12: #{tpu_custom_call.1} parent=1 // pred_region
      %s42 = ssub.s32 2048, 2048
      %43 = vsyncadd [#allocation6], %s42
      %s44 = sshll.u32 [#allocation7], 4
      %s45 = int_to_ptr.vmem [resolvable:$true] %s44
      %50 = dma.hbm_to_vmem [thread:$0]  %s2, 2048, %s45, [#allocation6], 128, 128, 8
    $region13: #{tpu_custom_call.1} parent=1 // pred_fallthru
      _
    // Predicated region
    $region14: #{tpu_custom_call.1} parent=1 // pred_check
      _
    $region15: #{tpu_custom_call.1} parent=1 // pred_check_branch
      %52 = sbr.rel (0) target = $region17
    $region16: #{tpu_custom_call.1} parent=1 // pred_region
      %s54 = ssub.s32 2048, 2048
      %55 = vsyncadd [#allocation9], %s54
      %s56 = sshll.u32 [#allocation8], 4
      %s57 = int_to_ptr.vmem [resolvable:$true] %s56
      %62 = dma.hbm_to_vmem [thread:$0]  %s3, 2048, %s57, [#allocation9], 128, 128, 8
    $region17: #{tpu_custom_call.1} parent=1 // pred_fallthru
      _
    // Predicated region
    $region18: #{tpu_custom_call.1} parent=1 // pred_check
      _
    $region19: #{tpu_custom_call.1} parent=1 // pred_check_branch
      %64 = sbr.rel (0) target = $region21
    $region20: #{tpu_custom_call.1} parent=1 // pred_region
      _
    $region21: #{tpu_custom_call.1} parent=1 // pred_fallthru
      _
    // Predicated region
    $region22: #{tpu_custom_call.1} parent=1 // pred_check
      _
    $region23: #{tpu_custom_call.1} parent=1 // pred_check_branch
      %66 = sbr.rel (0) target = $region25
    $region24: #{tpu_custom_call.1} parent=1 // pred_region
      %s68 = ssub.s32 2048, 2048
      %69 = vsyncadd [#allocation9], %s68
      %s70 = sshll.u32 [#allocation10], 4
      %s71 = int_to_ptr.vmem [resolvable:$true] %s70
      %76 = dma.hbm_to_vmem [thread:$0]  %s5, 2048, %s71, [#allocation9], 128, 128, 8
    $region25: #{tpu_custom_call.1} parent=1 // pred_fallthru
      _
    // Predicated region
    $region26: #{tpu_custom_call.1} parent=1 // pred_check
      _
    $region27: #{tpu_custom_call.1} parent=1 // pred_check_branch
      %78 = sbr.rel (0) target = $region29
    $region28: #{tpu_custom_call.1} parent=1 // pred_region
      _
    $region29: #{tpu_custom_call.1} parent=1 // pred_fallthru
      _
    // Predicated region
    $region30: #{tpu_custom_call.1} parent=1 // pred_check
      _
    $region31: #{tpu_custom_call.1} parent=1 // pred_check_branch
      %80 = sbr.rel (0) target = $region33
    $region32: #{tpu_custom_call.1} parent=1 // pred_region
      %s82 = ssub.s32 2048, 2048
      %83 = vsyncadd [#allocation12], %s82
      %s84 = sshll.u32 [#allocation11], 4
      %s85 = int_to_ptr.vmem [resolvable:$true] %s84
      %90 = dma.hbm_to_vmem [thread:$0]  %s7, 2048, %s85, [#allocation12], 128, 128, 8
    $region33: #{tpu_custom_call.1} parent=1 // pred_fallthru
      _
    // Predicated region
    $region34: #{tpu_custom_call.1} parent=1 // pred_check
      _
    $region35: #{tpu_custom_call.1} parent=1 // pred_check_branch
      %92 = sbr.rel (0) target = $region37
    $region36: #{tpu_custom_call.1} parent=1 // pred_region
      _
    $region37: #{tpu_custom_call.1} parent=1 // pred_fallthru
      _
    // Predicated region
    $region38: #{tpu_custom_call.1} parent=1 // pred_check
      _
    $region39: #{tpu_custom_call.1} parent=1 // pred_check_branch
      %94 = sbr.rel (0) target = $region41
    $region40: #{tpu_custom_call.1} parent=1 // pred_region
      %95 = dma.done [#allocation3], 128
    $region41: #{tpu_custom_call.1} parent=1 // pred_fallthru
      _
    // Predicated region
    $region42: #{tpu_custom_call.1} parent=1 // pred_check
      _
    $region43: #{tpu_custom_call.1} parent=1 // pred_check_branch
      %97 = sbr.rel (0) target = $region45
    $region44: #{tpu_custom_call.1} parent=1 // pred_region
      %98 = dma.done [#allocation6], 128
    $region45: #{tpu_custom_call.1} parent=1 // pred_fallthru
      _
    // Predicated region
    $region46: #{tpu_custom_call.1} parent=1 // pred_check
      _
    $region47: #{tpu_custom_call.1} parent=1 // pred_check_branch
      %100 = sbr.rel (0) target = $region49
    $region48: #{tpu_custom_call.1} parent=1 // pred_region
      %101 = dma.done [#allocation6], 2048
    $region49: #{tpu_custom_call.1} parent=1 // pred_fallthru
      _
    // Predicated region
    $region50: #{tpu_custom_call.1} parent=1 // pred_check
      _
    $region51: #{tpu_custom_call.1} parent=1 // pred_check_branch
      %103 = sbr.rel (0) target = $region53
    $region52: #{tpu_custom_call.1} parent=1 // pred_region
      %104 = dma.done [#allocation9], 2048
    $region53: #{tpu_custom_call.1} parent=1 // pred_fallthru
      _
    // Predicated region
    $region54: #{tpu_custom_call.1} parent=1 // pred_check
      _
    $region55: #{tpu_custom_call.1} parent=1 // pred_check_branch
      %106 = sbr.rel (0) target = $region57
    $region56: #{tpu_custom_call.1} parent=1 // pred_region
      %107 = dma.done [#allocation9], 2048
    $region57: #{tpu_custom_call.1} parent=1 // pred_fallthru
      _
    // Predicated region
    $region58: #{tpu_custom_call.1} parent=1 // pred_check
      _
    $region59: #{tpu_custom_call.1} parent=1 // pred_check_branch
      %109 = sbr.rel (0) target = $region61
    $region60: #{tpu_custom_call.1} parent=1 // pred_region
      %110 = dma.done [#allocation12], 2048
    $region61: #{tpu_custom_call.1} parent=1 // pred_fallthru
      _
    %v111 = vld [vmem:[#allocation2] sm:$0xff]
    %v112 = vld [vmem:[#allocation7] sm:$0xff]
    %v113 = vld [vmem:[#allocation7 + $0x8] sm:$0xff]
    %v114 = vld [vmem:[#allocation7 + $0x10] sm:$0xff]
    %v115 = vld [vmem:[#allocation7 + $0x18] sm:$0xff]
    %v116 = vld [vmem:[#allocation7 + $0x20] sm:$0xff]
    %v117 = vld [vmem:[#allocation7 + $0x28] sm:$0xff]
    %v118 = vld [vmem:[#allocation7 + $0x30] sm:$0xff]
    %v119 = vld [vmem:[#allocation7 + $0x38] sm:$0xff]
    %v120 = vld [vmem:[#allocation7 + $0x40] sm:$0xff]
    %v121 = vld [vmem:[#allocation7 + $0x48] sm:$0xff]
    %v122 = vld [vmem:[#allocation7 + $0x50] sm:$0xff]
    %v123 = vld [vmem:[#allocation7 + $0x58] sm:$0xff]
    %v124 = vld [vmem:[#allocation7 + $0x60] sm:$0xff]
    %v125 = vld [vmem:[#allocation7 + $0x68] sm:$0xff]
    %v126 = vld [vmem:[#allocation7 + $0x70] sm:$0xff]
    %v127 = vld [vmem:[#allocation7 + $0x78] sm:$0xff]
    %v128 = vld [vmem:[#allocation5] sm:$0xff]
    %v129 = vld [vmem:[#allocation8] sm:$0xff]
    %v130 = vld [vmem:[#allocation8 + $0x8] sm:$0xff]
    %v131 = vld [vmem:[#allocation8 + $0x10] sm:$0xff]
    %v132 = vld [vmem:[#allocation8 + $0x18] sm:$0xff]
    %v133 = vld [vmem:[#allocation8 + $0x20] sm:$0xff]
    %v134 = vld [vmem:[#allocation8 + $0x28] sm:$0xff]
    %v135 = vld [vmem:[#allocation8 + $0x30] sm:$0xff]
    %v136 = vld [vmem:[#allocation8 + $0x38] sm:$0xff]
    %v137 = vld [vmem:[#allocation8 + $0x40] sm:$0xff]
    %v138 = vld [vmem:[#allocation8 + $0x48] sm:$0xff]
    %v139 = vld [vmem:[#allocation8 + $0x50] sm:$0xff]
    %v140 = vld [vmem:[#allocation8 + $0x58] sm:$0xff]
    %v141 = vld [vmem:[#allocation8 + $0x60] sm:$0xff]
    %v142 = vld [vmem:[#allocation8 + $0x68] sm:$0xff]
    %v143 = vld [vmem:[#allocation8 + $0x70] sm:$0xff]
    %v144 = vld [vmem:[#allocation8 + $0x78] sm:$0xff]
    %145 = vmatprep.subr.mxu0 0.0
    %146 = vmatpush1.msra.mxu0 %v129
    %147 = vmatprep.subr.mxu0 0.0
    %148 = vmatpush1.msra.mxu0 %v130
    %149 = vmatprep.subr.mxu0 0.0
    %150 = vmatpush1.msra.mxu0 %v131
    %151 = vmatprep.subr.mxu0 0.0
    %152 = vmatpush1.msra.mxu0 %v132
    %153 = vmatprep.subr.mxu0 0.0
    %154 = vmatpush1.msra.mxu0 %v133
    %155 = vmatprep.subr.mxu0 0.0
    %156 = vmatpush1.msra.mxu0 %v134
    %157 = vmatprep.subr.mxu0 0.0
    %158 = vmatpush1.msra.mxu0 %v135
    %159 = vmatprep.subr.mxu0 0.0
    %160 = vmatpush1.msra.mxu0 %v136
    %161 = vmatprep.subr.mxu0 0.0
    %162 = vmatpush1.msra.mxu0 %v137
    %163 = vmatprep.subr.mxu0 0.0
    %164 = vmatpush1.msra.mxu0 %v138
    %165 = vmatprep.subr.mxu0 0.0
    %166 = vmatpush1.msra.mxu0 %v139
    %167 = vmatprep.subr.mxu0 0.0
    %168 = vmatpush1.msra.mxu0 %v140
    %169 = vmatprep.subr.mxu0 0.0
    %170 = vmatpush1.msra.mxu0 %v141
    %171 = vmatprep.subr.mxu0 0.0
    %172 = vmatpush1.msra.mxu0 %v142
    %173 = vmatprep.subr.mxu0 0.0
    %174 = vmatpush1.msra.mxu0 %v143
    %175 = vmatprep.subr.mxu0 0.0
    %176 = vmatpush1.msra.mxu0 %v144
    %177 = vmatprep.subr.mxu0 0.0
    %178 = vmatpush1.msra.mxu0 0.0
    %179 = vmatprep.subr.mxu0 0.0
    %180 = vmatpush1.msra.mxu0 0.0
    %181 = vmatprep.subr.mxu0 0.0
    %182 = vmatpush1.msra.mxu0 0.0
    %183 = vmatprep.subr.mxu0 0.0
    %184 = vmatpush1.msra.mxu0 0.0
    %185 = vmatprep.subr.mxu0 0.0
    %186 = vmatpush1.msra.mxu0 0.0
    %187 = vmatprep.subr.mxu0 0.0
    %188 = vmatpush1.msra.mxu0 0.0
    %189 = vmatprep.subr.mxu0 0.0
    %190 = vmatpush1.msra.mxu0 0.0
    %191 = vmatprep.subr.mxu0 0.0
    %192 = vmatpush1.msra.mxu0 0.0
    %193 = vmatprep.subr.mxu0 0.0
    %194 = vmatpush1.msra.mxu0 0.0
    %195 = vmatprep.subr.mxu0 0.0
    %196 = vmatpush1.msra.mxu0 0.0
    %197 = vmatprep.subr.mxu0 0.0
    %198 = vmatpush1.msra.mxu0 0.0
    %199 = vmatprep.subr.mxu0 0.0
    %200 = vmatpush1.msra.mxu0 0.0
    %201 = vmatprep.subr.mxu0 0.0
    %202 = vmatpush1.msra.mxu0 0.0
    %203 = vmatprep.subr.mxu0 0.0
    %204 = vmatpush1.msra.mxu0 0.0
    %205 = vmatprep.subr.mxu0 0.0
    %206 = vmatpush1.msra.mxu0 0.0
    %207 = vmatprep.subr.mxu0 0.0
    %208 = vmatpush1.msra.mxu0 0.0
    %209 = vmatprep.mubr.f32.mxu0 0.0
    %210 = vmatmul.mubr.f32.gmra.mrb[0].mxu0 %v128
    %v211 = vpop.f32.mrb[0].mxu0
    %v212 = vadd.f32 0.0, %v211
    %v213 = vpop.f32.mrb[0].mxu0
    %214 = vdwg.mxu0
    %215 = vmatprep.subr.mxu0 0.0
    %216 = vmatpush1.msra.mxu0 %v112
    %217 = vmatprep.subr.mxu0 0.0
    %218 = vmatpush1.msra.mxu0 %v113
    %219 = vmatprep.subr.mxu0 0.0
    %220 = vmatpush1.msra.mxu0 %v114
    %221 = vmatprep.subr.mxu0 0.0
    %222 = vmatpush1.msra.mxu0 %v115
    %223 = vmatprep.subr.mxu0 0.0
    %224 = vmatpush1.msra.mxu0 %v116
    %225 = vmatprep.subr.mxu0 0.0
    %226 = vmatpush1.msra.mxu0 %v117
    %227 = vmatprep.subr.mxu0 0.0
    %228 = vmatpush1.msra.mxu0 %v118
    %229 = vmatprep.subr.mxu0 0.0
    %230 = vmatpush1.msra.mxu0 %v119
    %231 = vmatprep.subr.mxu0 0.0
    %232 = vmatpush1.msra.mxu0 %v120
    %233 = vmatprep.subr.mxu0 0.0
    %234 = vmatpush1.msra.mxu0 %v121
    %235 = vmatprep.subr.mxu0 0.0
    %236 = vmatpush1.msra.mxu0 %v122
    %237 = vmatprep.subr.mxu0 0.0
    %238 = vmatpush1.msra.mxu0 %v123
    %239 = vmatprep.subr.mxu0 0.0
    %240 = vmatpush1.msra.mxu0 %v124
    %241 = vmatprep.subr.mxu0 0.0
    %242 = vmatpush1.msra.mxu0 %v125
    %243 = vmatprep.subr.mxu0 0.0
    %244 = vmatpush1.msra.mxu0 %v126
    %245 = vmatprep.subr.mxu0 0.0
    %246 = vmatpush1.msra.mxu0 %v127
    %247 = vmatprep.subr.mxu0 0.0
    %248 = vmatpush1.msra.mxu0 0.0
    %249 = vmatprep.subr.mxu0 0.0
    %250 = vmatpush1.msra.mxu0 0.0
    %251 = vmatprep.subr.mxu0 0.0
    %252 = vmatpush1.msra.mxu0 0.0
    %253 = vmatprep.subr.mxu0 0.0
    %254 = vmatpush1.msra.mxu0 0.0
    %255 = vmatprep.subr.mxu0 0.0
    %256 = vmatpush1.msra.mxu0 0.0
    %257 = vmatprep.subr.mxu0 0.0
    %258 = vmatpush1.msra.mxu0 0.0
    %259 = vmatprep.subr.mxu0 0.0
    %260 = vmatpush1.msra.mxu0 0.0
    %261 = vmatprep.subr.mxu0 0.0
    %262 = vmatpush1.msra.mxu0 0.0
    %263 = vmatprep.subr.mxu0 0.0
    %264 = vmatpush1.msra.mxu0 0.0
    %265 = vmatprep.subr.mxu0 0.0
    %266 = vmatpush1.msra.mxu0 0.0
    %267 = vmatprep.subr.mxu0 0.0
    %268 = vmatpush1.msra.mxu0 0.0
    %269 = vmatprep.subr.mxu0 0.0
    %270 = vmatpush1.msra.mxu0 0.0
    %271 = vmatprep.subr.mxu0 0.0
    %272 = vmatpush1.msra.mxu0 0.0
    %273 = vmatprep.subr.mxu0 0.0
    %274 = vmatpush1.msra.mxu0 0.0
    %275 = vmatprep.subr.mxu0 0.0
    %276 = vmatpush1.msra.mxu0 0.0
    %277 = vmatprep.subr.mxu0 0.0
    %278 = vmatpush1.msra.mxu0 0.0
    %279 = vmatprep.mubr.f32.mxu0 0.0
    %280 = vmatmul.mubr.f32.gmra.mrb[0].mxu0 %v111
    %v281 = vpop.f32.mrb[0].mxu0
    %v282 = vadd.f32 %v212, %v281
    %v283 = vpop.f32.mrb[0].mxu0
    %284 = vdwg.mxu0
    %v285 = vld [vmem:[%s4] sm:$0x1]
    %v287 = vlaneseq
    %v288 = vshrl.u32 %v287, 7
    %v289 = vsub.s32 0, %v288
    %v290 = vrot.slane %v285, %v289
    %v292 = vadd.f32 %v282, %v290
    %v293 = vmax.f32 %v292, 0.0
    %v294 = vld [vmem:[#allocation10] sm:$0xff]
    %v295 = vld [vmem:[#allocation10 + $0x8] sm:$0xff]
    %v296 = vld [vmem:[#allocation10 + $0x10] sm:$0xff]
    %v297 = vld [vmem:[#allocation10 + $0x18] sm:$0xff]
    %v298 = vld [vmem:[#allocation10 + $0x20] sm:$0xff]
    %v299 = vld [vmem:[#allocation10 + $0x28] sm:$0xff]
    %v300 = vld [vmem:[#allocation10 + $0x30] sm:$0xff]
    %v301 = vld [vmem:[#allocation10 + $0x38] sm:$0xff]
    %v302 = vld [vmem:[#allocation10 + $0x40] sm:$0xff]
    %v303 = vld [vmem:[#allocation10 + $0x48] sm:$0xff]
    %v304 = vld [vmem:[#allocation10 + $0x50] sm:$0xff]
    %v305 = vld [vmem:[#allocation10 + $0x58] sm:$0xff]
    %v306 = vld [vmem:[#allocation10 + $0x60] sm:$0xff]
    %v307 = vld [vmem:[#allocation10 + $0x68] sm:$0xff]
    %v308 = vld [vmem:[#allocation10 + $0x70] sm:$0xff]
    %v309 = vld [vmem:[#allocation10 + $0x78] sm:$0xff]
    %v310 = vld [vmem:[%s6] sm:$0x1]
    %v312 = vlaneseq
    %v313 = vshrl.u32 %v312, 7
    %v314 = vsub.s32 0, %v313
    %v315 = vrot.slane %v310, %v314
    %317 = vmatprep.subr.mxu0 0.0
    %318 = vmatpush1.msra.mxu0 %v294
    %319 = vmatprep.subr.mxu0 0.0
    %320 = vmatpush1.msra.mxu0 %v295
    %321 = vmatprep.subr.mxu0 0.0
    %322 = vmatpush1.msra.mxu0 %v296
    %323 = vmatprep.subr.mxu0 0.0
    %324 = vmatpush1.msra.mxu0 %v297
    %325 = vmatprep.subr.mxu0 0.0
    %326 = vmatpush1.msra.mxu0 %v298
    %327 = vmatprep.subr.mxu0 0.0
    %328 = vmatpush1.msra.mxu0 %v299
    %329 = vmatprep.subr.mxu0 0.0
    %330 = vmatpush1.msra.mxu0 %v300
    %331 = vmatprep.subr.mxu0 0.0
    %332 = vmatpush1.msra.mxu0 %v301
    %333 = vmatprep.subr.mxu0 0.0
    %334 = vmatpush1.msra.mxu0 %v302
    %335 = vmatprep.subr.mxu0 0.0
    %336 = vmatpush1.msra.mxu0 %v303
    %337 = vmatprep.subr.mxu0 0.0
    %338 = vmatpush1.msra.mxu0 %v304
    %339 = vmatprep.subr.mxu0 0.0
    %340 = vmatpush1.msra.mxu0 %v305
    %341 = vmatprep.subr.mxu0 0.0
    %342 = vmatpush1.msra.mxu0 %v306
    %343 = vmatprep.subr.mxu0 0.0
    %344 = vmatpush1.msra.mxu0 %v307
    %345 = vmatprep.subr.mxu0 0.0
    %346 = vmatpush1.msra.mxu0 %v308
    %347 = vmatprep.subr.mxu0 0.0
    %348 = vmatpush1.msra.mxu0 %v309
    %349 = vmatprep.subr.mxu0 0.0
    %350 = vmatpush1.msra.mxu0 0.0
    %351 = vmatprep.subr.mxu0 0.0
    %352 = vmatpush1.msra.mxu0 0.0
    %353 = vmatprep.subr.mxu0 0.0
    %354 = vmatpush1.msra.mxu0 0.0
    %355 = vmatprep.subr.mxu0 0.0
    %356 = vmatpush1.msra.mxu0 0.0
    %357 = vmatprep.subr.mxu0 0.0
    %358 = vmatpush1.msra.mxu0 0.0
    %359 = vmatprep.subr.mxu0 0.0
    %360 = vmatpush1.msra.mxu0 0.0
    %361 = vmatprep.subr.mxu0 0.0
    %362 = vmatpush1.msra.mxu0 0.0
    %363 = vmatprep.subr.mxu0 0.0
    %364 = vmatpush1.msra.mxu0 0.0
    %365 = vmatprep.subr.mxu0 0.0
    %366 = vmatpush1.msra.mxu0 0.0
    %367 = vmatprep.subr.mxu0 0.0
    %368 = vmatpush1.msra.mxu0 0.0
    %369 = vmatprep.subr.mxu0 0.0
    %370 = vmatpush1.msra.mxu0 0.0
    %371 = vmatprep.subr.mxu0 0.0
    %372 = vmatpush1.msra.mxu0 0.0
    %373 = vmatprep.subr.mxu0 0.0
    %374 = vmatpush1.msra.mxu0 0.0
    %375 = vmatprep.subr.mxu0 0.0
    %376 = vmatpush1.msra.mxu0 0.0
    %377 = vmatprep.subr.mxu0 0.0
    %378 = vmatpush1.msra.mxu0 0.0
    %379 = vmatprep.subr.mxu0 0.0
    %380 = vmatpush1.msra.mxu0 0.0
    %381 = vmatprep.mubr.f32.mxu0 0.0
    %382 = vmatmul.mubr.f32.gmra.mrb[0].mxu0 %v293
    %v383 = vpop.f32.mrb[0].mxu0
    %v384 = vadd.f32 %v315, %v383
    %v385 = vpop.f32.mrb[0].mxu0
    %386 = vdwg.mxu0
    %v387 = vmax.f32 %v384, 0.0
    %v388 = vld [vmem:[#allocation11] sm:$0xff]
    %v389 = vld [vmem:[#allocation11 + $0x8] sm:$0xff]
    %v390 = vld [vmem:[#allocation11 + $0x10] sm:$0xff]
    %v391 = vld [vmem:[#allocation11 + $0x18] sm:$0xff]
    %v392 = vld [vmem:[#allocation11 + $0x20] sm:$0xff]
    %v393 = vld [vmem:[#allocation11 + $0x28] sm:$0xff]
    %v394 = vld [vmem:[#allocation11 + $0x30] sm:$0xff]
    %v395 = vld [vmem:[#allocation11 + $0x38] sm:$0xff]
    %v396 = vld [vmem:[#allocation11 + $0x40] sm:$0xff]
    %v397 = vld [vmem:[#allocation11 + $0x48] sm:$0xff]
    %v398 = vld [vmem:[#allocation11 + $0x50] sm:$0xff]
    %v399 = vld [vmem:[#allocation11 + $0x58] sm:$0xff]
    %v400 = vld [vmem:[#allocation11 + $0x60] sm:$0xff]
    %v401 = vld [vmem:[#allocation11 + $0x68] sm:$0xff]
    %v402 = vld [vmem:[#allocation11 + $0x70] sm:$0xff]
    %v403 = vld [vmem:[#allocation11 + $0x78] sm:$0xff]
    %v404 = vld [vmem:[%s8] sm:$0x1]
    %v406 = vlaneseq
    %v407 = vshrl.u32 %v406, 7
    %v408 = vsub.s32 0, %v407
    %v409 = vrot.slane %v404, %v408
    %411 = vmatprep.subr.mxu0 0.0
    %412 = vmatpush1.msra.mxu0 %v388
    %413 = vmatprep.subr.mxu0 0.0
    %414 = vmatpush1.msra.mxu0 %v389
    %415 = vmatprep.subr.mxu0 0.0
    %416 = vmatpush1.msra.mxu0 %v390
    %417 = vmatprep.subr.mxu0 0.0
    %418 = vmatpush1.msra.mxu0 %v391
    %419 = vmatprep.subr.mxu0 0.0
    %420 = vmatpush1.msra.mxu0 %v392
    %421 = vmatprep.subr.mxu0 0.0
    %422 = vmatpush1.msra.mxu0 %v393
    %423 = vmatprep.subr.mxu0 0.0
    %424 = vmatpush1.msra.mxu0 %v394
    %425 = vmatprep.subr.mxu0 0.0
    %426 = vmatpush1.msra.mxu0 %v395
    %427 = vmatprep.subr.mxu0 0.0
    %428 = vmatpush1.msra.mxu0 %v396
    %429 = vmatprep.subr.mxu0 0.0
    %430 = vmatpush1.msra.mxu0 %v397
    %431 = vmatprep.subr.mxu0 0.0
    %432 = vmatpush1.msra.mxu0 %v398
    %433 = vmatprep.subr.mxu0 0.0
    %434 = vmatpush1.msra.mxu0 %v399
    %435 = vmatprep.subr.mxu0 0.0
    %436 = vmatpush1.msra.mxu0 %v400
    %437 = vmatprep.subr.mxu0 0.0
    %438 = vmatpush1.msra.mxu0 %v401
    %439 = vmatprep.subr.mxu0 0.0
    %440 = vmatpush1.msra.mxu0 %v402
    %441 = vmatprep.subr.mxu0 0.0
    %442 = vmatpush1.msra.mxu0 %v403
    %443 = vmatprep.subr.mxu0 0.0
    %444 = vmatpush1.msra.mxu0 0.0
    %445 = vmatprep.subr.mxu0 0.0
    %446 = vmatpush1.msra.mxu0 0.0
    %447 = vmatprep.subr.mxu0 0.0
    %448 = vmatpush1.msra.mxu0 0.0
    %449 = vmatprep.subr.mxu0 0.0
    %450 = vmatpush1.msra.mxu0 0.0
    %451 = vmatprep.subr.mxu0 0.0
    %452 = vmatpush1.msra.mxu0 0.0
    %453 = vmatprep.subr.mxu0 0.0
    %454 = vmatpush1.msra.mxu0 0.0
    %455 = vmatprep.subr.mxu0 0.0
    %456 = vmatpush1.msra.mxu0 0.0
    %457 = vmatprep.subr.mxu0 0.0
    %458 = vmatpush1.msra.mxu0 0.0
    %459 = vmatprep.subr.mxu0 0.0
    %460 = vmatpush1.msra.mxu0 0.0
    %461 = vmatprep.subr.mxu0 0.0
    %462 = vmatpush1.msra.mxu0 0.0
    %463 = vmatprep.subr.mxu0 0.0
    %464 = vmatpush1.msra.mxu0 0.0
    %465 = vmatprep.subr.mxu0 0.0
    %466 = vmatpush1.msra.mxu0 0.0
    %467 = vmatprep.subr.mxu0 0.0
    %468 = vmatpush1.msra.mxu0 0.0
    %469 = vmatprep.subr.mxu0 0.0
    %470 = vmatpush1.msra.mxu0 0.0
    %471 = vmatprep.subr.mxu0 0.0
    %472 = vmatpush1.msra.mxu0 0.0
    %473 = vmatprep.subr.mxu0 0.0
    %474 = vmatpush1.msra.mxu0 0.0
    %475 = vmatprep.mubr.f32.mxu0 0.0
    %476 = vmatmul.mubr.f32.gmra.mrb[0].mxu0 %v387
    %v477 = vpop.f32.mrb[0].mxu0
    %v478 = vadd.f32 %v409, %v477
    %v479 = vpop.f32.mrb[0].mxu0
    %480 = vdwg.mxu0
    %481 = vst [vmem:[#allocation13] sm:$0xff] %v478
    // Predicated region
    $region62: #{tpu_custom_call.1} parent=1 // pred_check
      _
    $region63: #{tpu_custom_call.1} parent=1 // pred_check_branch
      %483 = sbr.rel (0) target = $region65
    $region64: #{tpu_custom_call.1} parent=1 // pred_region
      %s485 = ssub.s32 128, 128
      %486 = vsyncadd [#allocation4], %s485
      %s488 = sshll.u32 [#allocation13], 4
      %s489 = int_to_ptr.vmem [resolvable:$true] %s488
      %491 = dma.vmem_to_hbm [thread:$0]  %s489, 128, %s9, [#allocation4]
    $region65: #{tpu_custom_call.1} parent=1 // pred_fallthru
      _
    // Predicated region
    $region66: #{tpu_custom_call.1} parent=1 // pred_check
      _
    $region67: #{tpu_custom_call.1} parent=1 // pred_check_branch
      %493 = sbr.rel (0) target = $region69
    $region68: #{tpu_custom_call.1} parent=1 // pred_region
      %494 = dma.done [#allocation4], 128
    $region69: #{tpu_custom_call.1} parent=1 // pred_fallthru
      _
    %495 = vsyncpa [#allocation3], 1
    %496 = vsyncpa [#allocation6], 1
    %497 = vsyncpa [#allocation9], 1
    %498 = vsyncpa [#allocation12], 1
    %499 = vsyncpa [#allocation4], 1

</llo_original>
